<compile_context>
chip_gen: v7x
topology: tpu7x:2x2x1
jax: 0.10.0
libtpu: 0.0.40
codegen_flags: <defaults>
</compile_context>

<pallas_src>
import jax
import jax.numpy as jnp
from jax.experimental import pallas as pl
from jax.experimental.pallas import tpu as pltpu

TILE_B = 4096   # batch tile for the streamed path (multiple of 8)


def _linear_leaky_kernel(slope_ref, x_ref, wt_ref, b_ref, o_ref):
    """o = leaky_relu(x @ Wt + b, slope).

    x_ref:     (TB, IN)  VMEM
    wt_ref:    (IN, OUT) VMEM  (weight pre-transposed once at param prep)
    b_ref:     (1, OUT)  VMEM
    slope_ref: (1,)      SMEM scalar (learnable parameter)
    o_ref:     (TB, OUT) VMEM
    """
    t1 = jnp.dot(x_ref[...], wt_ref[...],
                 preferred_element_type=jnp.float32) + b_ref[...]
    slope = slope_ref[0]
    o_ref[...] = jnp.where(t1 > 0, t1, t1 * slope).astype(o_ref.dtype)


def _linear_leaky_single_tile(x, w_t, bias2d, negative_slope):
    """Whole problem in one VMEM tile; no grid -> no pipelining scaffolding."""
    B, _ = x.shape
    OUT = w_t.shape[1]
    return pl.pallas_call(
        _linear_leaky_kernel,
        out_shape=jax.ShapeDtypeStruct((B, OUT), x.dtype),
        in_specs=[
            pl.BlockSpec(memory_space=pltpu.SMEM),   # negative_slope (1,)
            pl.BlockSpec(memory_space=pltpu.VMEM),   # x      (B, IN)
            pl.BlockSpec(memory_space=pltpu.VMEM),   # weight (IN, OUT)
            pl.BlockSpec(memory_space=pltpu.VMEM),   # bias   (1, OUT)
        ],
        out_specs=pl.BlockSpec(memory_space=pltpu.VMEM),
    )(negative_slope, x, w_t, bias2d)


def _linear_leaky_tiled(x, w_t, bias2d, negative_slope):
    """Batch-tiled path for large B: weight/bias VMEM-resident, x streamed,
    unpadded output, natural edge handling on the last partial tile."""
    B, IN = x.shape
    OUT = w_t.shape[1]
    grid = (pl.cdiv(B, TILE_B),)
    return pl.pallas_call(
        _linear_leaky_kernel,
        out_shape=jax.ShapeDtypeStruct((B, OUT), x.dtype),
        grid=grid,
        in_specs=[
            pl.BlockSpec(memory_space=pltpu.SMEM),          # slope (scalar)
            pl.BlockSpec((TILE_B, IN), lambda i: (i, 0)),   # x tile (streamed)
            pl.BlockSpec((IN, OUT), lambda i: (0, 0)),      # weight (resident)
            pl.BlockSpec((1, OUT), lambda i: (0, 0)),       # bias   (resident)
        ],
        out_specs=pl.BlockSpec((TILE_B, OUT), lambda i: (i, 0)),
        compiler_params=pltpu.CompilerParams(
            dimension_semantics=("parallel",)),
    )(negative_slope, x, w_t, bias2d)


@jax.jit
def linear_leaky(x, w_t, bias2d, negative_slope):
    """x: (B, IN) f32, w_t: (IN, OUT) f32, bias2d: (1, OUT) f32,
    negative_slope: (1,) f32  ->  (B, OUT) f32"""
    B = x.shape[0]
    if B <= TILE_B:
        return _linear_leaky_single_tile(x, w_t, bias2d, negative_slope)
    return _linear_leaky_tiled(x, w_t, bias2d, negative_slope)


def reference(x, weight, bias, negative_slope):
    t1 = x @ weight.T + bias
    return jnp.where(t1 > 0, t1, t1 * negative_slope[0])


if __name__ == "__main__":
    key = jax.random.PRNGKey(0)
    k_x, k_w, k_b, k_xb = jax.random.split(key, 4)

    IN, OUT = 16, 8
    bound = 1.0 / (IN ** 0.5)
    weight = jax.random.uniform(k_w, (OUT, IN), jnp.float32, -bound, bound)
    bias = jax.random.uniform(k_b, (OUT,), jnp.float32, -bound, bound)
    negative_slope = jnp.array([0.01], dtype=jnp.float32)

    # Parameter prep done once (analogous to module __init__):
    # pre-transposed weight and 2-D bias, hoisted out of the per-call path.
    w_t = jnp.asarray(weight.T)          # (IN, OUT)
    bias2d = bias.reshape(1, OUT)        # (1, OUT)

    # Spec shape: x1 = torch.randn(1, 16) -> single-tile (no-grid) path.
    x1 = jax.random.normal(k_x, (1, IN), dtype=jnp.float32)
    out_small = jax.block_until_ready(
        linear_leaky(x1, w_t, bias2d, negative_slope))
    ref_small = reference(x1, weight, bias, negative_slope)
    assert out_small.shape == (1, OUT)
    assert jnp.allclose(out_small, ref_small, atol=1e-4, rtol=1e-4), (
        out_small, ref_small)

    # Batched template path -> tiled, weight-resident, unpadded output.
    # Non-multiple of TILE_B to exercise edge-block handling (>=2 grid tiles
    # so v7x can split across both TensorCores).
    B = 2 * TILE_B + 37
    xb = jax.random.normal(k_xb, (B, IN), dtype=jnp.float32)
    out_b = jax.block_until_ready(
        linear_leaky(xb, w_t, bias2d, negative_slope))
    ref_b = reference(xb, weight, bias, negative_slope)
    assert out_b.shape == (B, OUT)
    assert jnp.allclose(out_b, ref_b, atol=1e-3, rtol=1e-3)

    print("KERNEL_OK")
</pallas_src>

<mosaic_0001>
module attributes {stable_mosaic.version = 11 : i64} {
  func.func @_linear_leaky_kernel(%arg0: memref<1xf32, #tpu.memory_space<smem>>, %arg1: memref<1x16xf32, #tpu.memory_space<vmem>>, %arg2: memref<16x8xf32, #tpu.memory_space<vmem>>, %arg3: memref<1x8xf32, #tpu.memory_space<vmem>>, %arg4: memref<1x8xf32, #tpu.memory_space<vmem>>) attributes {dimension_semantics = [], scalar_prefetch = 0 : i64, scratch_operands = 0 : i64, tpu.core_type = #tpu.core_type<tc>} {
    %c0 = arith.constant 0 : index
    %c0_0 = arith.constant 0 : index
    %0 = vector.load %arg1[%c0, %c0_0] : memref<1x16xf32, #tpu.memory_space<vmem>>, vector<1x16xf32>
    %c0_1 = arith.constant 0 : index
    %c0_2 = arith.constant 0 : index
    %1 = vector.load %arg2[%c0_1, %c0_2] : memref<16x8xf32, #tpu.memory_space<vmem>>, vector<16x8xf32>
    %cst = arith.constant dense<0.000000e+00> : vector<1x8xf32>
    %2 = tpu.matmul %0, %1, %cst {dimension_numbers = #tpu.dot_dimension_numbers<[1], [0], [0], [1], [0, 0, 1, 1], [], []>} : vector<1x16xf32>, vector<16x8xf32>, vector<1x8xf32> -> vector<1x8xf32>
    %c0_3 = arith.constant 0 : index
    %c0_4 = arith.constant 0 : index
    %3 = vector.load %arg3[%c0_3, %c0_4] : memref<1x8xf32, #tpu.memory_space<vmem>>, vector<1x8xf32>
    %4 = arith.addf %2, %3 : vector<1x8xf32>
    %c0_5 = arith.constant 0 : index
    %5 = memref.load %arg0[%c0_5] : memref<1xf32, #tpu.memory_space<smem>>
    %cst_6 = arith.constant 0.000000e+00 : f32
    %6 = vector.broadcast %cst_6 : f32 to vector<1x8xf32>
    %7 = arith.cmpf ogt, %4, %6 : vector<1x8xf32>
    %8 = vector.broadcast %5 : f32 to vector<1x8xf32>
    %9 = arith.mulf %4, %8 : vector<1x8xf32>
    %10 = arith.select %7, %4, %9 : vector<1x8xi1>, vector<1x8xf32>
    %c0_7 = arith.constant 0 : index
    %c0_8 = arith.constant 0 : index
    %11 = vector.load %arg4[%c0_7, %c0_8] : memref<1x8xf32, #tpu.memory_space<vmem>>, vector<1x8xf32>
    tpu.vector_store %arg4[%c0_7, %c0_8], %10 {strides = array<i32>} : memref<1x8xf32, #tpu.memory_space<vmem>>, vector<1x8xf32>,
    return
  }
}

</mosaic_0001>

<llo_original>
// kernel: linear_leaky.1
$region0: #{linear_leaky.1}
  #allocation0 [shape = 'u32[]', space=smem, size = 0x4, offset = 0x4, fixed_abs, tag = 'smem constant byte address 0x4 - core index']
  #allocation1 [shape = 'u32[144,128]{1,0:T(1,128)}', space=vmem, size = 0x12000, scoped, tag = 'internal scratch']
  #allocation2 [shape = 'f32[1]{0:T(128)S(6)}', space=smem, size = 0x200, scoped, tag = 'scoped memory for linear_leaky.1']
  %s0 = inlined_call_operand.<no memory space> [shape: f32[1], index: 0, kind: input, shape index: {}]
  %s1 = inlined_call_operand.vmem [shape: f32[1,16], index: 1, kind: input, shape index: {}]
  %s2 = inlined_call_operand.vmem [shape: f32[16,8], index: 2, kind: input, shape index: {}]
  %s3 = inlined_call_operand.vmem [shape: f32[1,8], index: 3, kind: input, shape index: {}]
  %s4 = inlined_call_operand.hbm [shape: f32[1,8], index: 4, kind: output, shape index: {}]
  %s5 = sld [smem:[#allocation0]]
  $region26: #{linear_leaky.1} parent=0
    _
  %s7 = ssub.s32 1, %s5
  %s8 = scalar_select 0, %s7, %s5
  %9 = sst [smem:[#allocation2]] %s0
  $region1: #{linear_leaky.1} parent=0
    #allocation3 [shape = 'u8[512]{0}', space=vmem, size = 0x400, scoped, tag = 'output window, operand 0, single buffered']
    #allocation4 [shape = 's32[1]{0}', space=sflag, size = 0x4, scoped, tag = 'scoped memory for linear_leaky.1']
    %10 = vsyncpa [#allocation4], 0
    // Predicated region
    $region2: #{linear_leaky.1} parent=1 // pred_check
      _
    $region3: #{linear_leaky.1} parent=1 // pred_check_branch
      %12 = sbr.rel (0) target = $region5
    $region4: #{linear_leaky.1} parent=1 // pred_region
      _
    $region5: #{linear_leaky.1} parent=1 // pred_fallthru
      _
    // Predicated region
    $region6: #{linear_leaky.1} parent=1 // pred_check
      _
    $region7: #{linear_leaky.1} parent=1 // pred_check_branch
      %14 = sbr.rel (0) target = $region9
    $region8: #{linear_leaky.1} parent=1 // pred_region
      _
    $region9: #{linear_leaky.1} parent=1 // pred_fallthru
      _
    // Predicated region
    $region10: #{linear_leaky.1} parent=1 // pred_check
      _
    $region11: #{linear_leaky.1} parent=1 // pred_check_branch
      %16 = sbr.rel (0) target = $region13
    $region12: #{linear_leaky.1} parent=1 // pred_region
      _
    $region13: #{linear_leaky.1} parent=1 // pred_fallthru
      _
    // Predicated region
    $region14: #{linear_leaky.1} parent=1 // pred_check
      _
    $region15: #{linear_leaky.1} parent=1 // pred_check_branch
      %18 = sbr.rel (0) target = $region17
    $region16: #{linear_leaky.1} parent=1 // pred_region
      _
    $region17: #{linear_leaky.1} parent=1 // pred_fallthru
      _
    %v19 = vld [vmem:[%s1] sm:$0x1]
    %v20 = vld [vmem:[%s2] sm:$0xff]
    %v21 = vld [vmem:[%s2 + $0x8] sm:$0xff]
    %v22 = vld [vmem:[%s3] sm:$0x1]
    %vm23 = vcmask 130048
    %v25 = vsel %vm23, %v19, 0
    %27 = vmatprep.subr.mxu0 0.0
    %28 = vmatpush1.msra.mxu0 %v20
    %29 = vmatprep.subr.mxu0 0.0
    %30 = vmatpush1.msra.mxu0 %v21
    %31 = vmatprep.subr.mxu0 0.0
    %32 = vmatpush1.msra.mxu0 0.0
    %33 = vmatprep.subr.mxu0 0.0
    %34 = vmatpush1.msra.mxu0 0.0
    %35 = vmatprep.subr.mxu0 0.0
    %36 = vmatpush1.msra.mxu0 0.0
    %37 = vmatprep.subr.mxu0 0.0
    %38 = vmatpush1.msra.mxu0 0.0
    %39 = vmatprep.subr.mxu0 0.0
    %40 = vmatpush1.msra.mxu0 0.0
    %41 = vmatprep.subr.mxu0 0.0
    %42 = vmatpush1.msra.mxu0 0.0
    %43 = vmatprep.subr.mxu0 0.0
    %44 = vmatpush1.msra.mxu0 0.0
    %45 = vmatprep.subr.mxu0 0.0
    %46 = vmatpush1.msra.mxu0 0.0
    %47 = vmatprep.subr.mxu0 0.0
    %48 = vmatpush1.msra.mxu0 0.0
    %49 = vmatprep.subr.mxu0 0.0
    %50 = vmatpush1.msra.mxu0 0.0
    %51 = vmatprep.subr.mxu0 0.0
    %52 = vmatpush1.msra.mxu0 0.0
    %53 = vmatprep.subr.mxu0 0.0
    %54 = vmatpush1.msra.mxu0 0.0
    %55 = vmatprep.subr.mxu0 0.0
    %56 = vmatpush1.msra.mxu0 0.0
    %57 = vmatprep.subr.mxu0 0.0
    %58 = vmatpush1.msra.mxu0 0.0
    %59 = vmatprep.subr.mxu0 0.0
    %60 = vmatpush1.msra.mxu0 0.0
    %61 = vmatprep.subr.mxu0 0.0
    %62 = vmatpush1.msra.mxu0 0.0
    %63 = vmatprep.subr.mxu0 0.0
    %64 = vmatpush1.msra.mxu0 0.0
    %65 = vmatprep.subr.mxu0 0.0
    %66 = vmatpush1.msra.mxu0 0.0
    %67 = vmatprep.subr.mxu0 0.0
    %68 = vmatpush1.msra.mxu0 0.0
    %69 = vmatprep.subr.mxu0 0.0
    %70 = vmatpush1.msra.mxu0 0.0
    %71 = vmatprep.subr.mxu0 0.0
    %72 = vmatpush1.msra.mxu0 0.0
    %73 = vmatprep.subr.mxu0 0.0
    %74 = vmatpush1.msra.mxu0 0.0
    %75 = vmatprep.subr.mxu0 0.0
    %76 = vmatpush1.msra.mxu0 0.0
    %77 = vmatprep.subr.mxu0 0.0
    %78 = vmatpush1.msra.mxu0 0.0
    %79 = vmatprep.subr.mxu0 0.0
    %80 = vmatpush1.msra.mxu0 0.0
    %81 = vmatprep.subr.mxu0 0.0
    %82 = vmatpush1.msra.mxu0 0.0
    %83 = vmatprep.subr.mxu0 0.0
    %84 = vmatpush1.msra.mxu0 0.0
    %85 = vmatprep.subr.mxu0 0.0
    %86 = vmatpush1.msra.mxu0 0.0
    %87 = vmatprep.subr.mxu0 0.0
    %88 = vmatpush1.msra.mxu0 0.0
    %89 = vmatprep.subr.mxu0 0.0
    %90 = vmatpush1.msra.mxu0 0.0
    %91 = vmatprep.mubr.f32.mxu0 0.0
    %92 = vmatmul.mubr.f32.gmra.mrb[0].mxu0 %v25
    %v93 = vpop.f32.mrb[0].mxu0
    %v94 = vadd.f32 %v22, %v93
    %v95 = vpop.f32.mrb[0].mxu0
    %96 = vdwg.mxu0
    %s97 = sld [smem:[#allocation2]]
    %vm98 = vcmp.gt.f32.partialorder %v94, 0.0
    %v99 = vstv %s97
    %v100 = vmul.f32 %v94, %v99
    %v101 = vsel %vm98, %v94, %v100
    %vm102 = vcmask 57344
    %103 = vst.msk [vmem:[#allocation3] sm:$0x1] %vm102, %v101
    // Predicated region
    $region18: #{linear_leaky.1} parent=1 // pred_check
      _
    $region19: #{linear_leaky.1} parent=1 // pred_check_branch
      %105 = sbr.rel (0) target = $region21
    $region20: #{linear_leaky.1} parent=1 // pred_region
      %s107 = ssub.s32 16, 16
      %108 = vsyncadd [#allocation4], %s107
      %s110 = sshll.u32 [#allocation3], 4
      %s111 = int_to_ptr.vmem [resolvable:$true] %s110
      %113 = dma.vmem_to_hbm [thread:$0]  %s111, 16, %s4, [#allocation4]
    $region21: #{linear_leaky.1} parent=1 // pred_fallthru
      _
    // Predicated region
    $region22: #{linear_leaky.1} parent=1 // pred_check
      _
    $region23: #{linear_leaky.1} parent=1 // pred_check_branch
      %115 = sbr.rel (0) target = $region25
    $region24: #{linear_leaky.1} parent=1 // pred_region
      %116 = dma.done [#allocation4], 16
    $region25: #{linear_leaky.1} parent=1 // pred_fallthru
      _
    %117 = vsyncpa [#allocation4], 1

</llo_original>
